<compile_context>
chip_gen: v6e
topology: v6e:2x2x1
jax: 0.10.0
libtpu: 0.0.40
codegen_flags: <defaults>
</compile_context>

<pallas_src>
import jax
import jax.numpy as jnp
from jax.experimental import pallas as pl
from jax.experimental.pallas import tpu as pltpu

H1, H2 = 128, 64
MAX_TILE_B = 4096


def _round_up(x, m):
    return ((x + m - 1) // m) * m


def _choose_tile_b(batch):
    # >= 4 grid steps at large batch (keeps both v7x TensorCores fed via the
    # "parallel" batch axis), >= 16 rows (bf16 sublane packing), and
    # <= MAX_TILE_B.  Large tiles amortize the ~0.35us per-grid-step overhead;
    # a double-buffered (4096, 32) f32 input tile is only ~1 MiB of VMEM so no
    # vmem_limit_bytes override is needed on any generation.
    want = _round_up(max(pl.cdiv(batch, 4), 16), 16)
    return min(MAX_TILE_B, want)


def dqn_kernel(x_ref, w1_ref, w2_ref, w3_ref, b1_ref, b2_ref, b3_ref, o_ref):
    # fc1 + relu: cast the f32 input tile to bf16 in-kernel (free VPU work in a
    # memory-bound regime); accumulate in f32 on the MXU.
    x = x_ref[...].astype(jnp.bfloat16)
    h1 = jnp.dot(x, w1_ref[...], preferred_element_type=jnp.float32)
    h1 = jnp.maximum(h1 + b1_ref[...], 0.0).astype(jnp.bfloat16)
    # fc2 + relu
    h2 = jnp.dot(h1, w2_ref[...], preferred_element_type=jnp.float32)
    h2 = jnp.maximum(h2 + b2_ref[...], 0.0).astype(jnp.bfloat16)
    # fc3 (no activation), true 8-wide output
    out = jnp.dot(h2, w3_ref[...], preferred_element_type=jnp.float32)
    o_ref[...] = (out + b3_ref[...]).astype(o_ref.dtype)


def init_params(key, input_size, output_size):
    """PyTorch-Linear-style init (uniform +/- 1/sqrt(fan_in)).

    Weights are stored (in_features, out_features) so forward is x @ W + b.
    """
    sizes = [(input_size, H1), (H1, H2), (H2, output_size)]
    params = []
    keys = jax.random.split(key, 2 * len(sizes))
    for i, (fan_in, fan_out) in enumerate(sizes):
        bound = 1.0 / (fan_in ** 0.5)
        w = jax.random.uniform(keys[2 * i], (fan_in, fan_out), jnp.float32, -bound, bound)
        b = jax.random.uniform(keys[2 * i + 1], (1, fan_out), jnp.float32, -bound, bound)
        params += [w, b]
    return tuple(params)


def prepare_params(params):
    """Cast weights to bf16 (f32 MXU accumulation in-kernel); biases stay f32."""
    w1, b1, w2, b2, w3, b3 = params
    return (w1.astype(jnp.bfloat16), w2.astype(jnp.bfloat16), w3.astype(jnp.bfloat16),
            b1, b2, b3)


def dqn_forward(x, prepared):
    """x: (batch, input_size) f32. Returns (batch, output_size) f32."""
    w1, w2, w3, b1, b2, b3 = prepared
    batch, in_size = x.shape
    out_size = w3.shape[1]

    tile_b = _choose_tile_b(batch)
    grid = (pl.cdiv(batch, tile_b),)  # trailing partial block handled by Pallas

    flops = 2 * batch * (in_size * H1 + H1 * H2 + H2 * out_size)
    bytes_accessed = (batch * in_size * 4                    # x read (f32, unpadded)
                      + 2 * (w1.size + w2.size + w3.size)    # bf16 weights, fetched once
                      + 4 * (b1.size + b2.size + b3.size)    # f32 biases, fetched once
                      + batch * out_size * 4)                # output write (f32, unpadded)

    const = lambda i: (0, 0)  # weights/biases: constant block => VMEM-resident
    # NOTE: pipeline_mode=pl.Buffered(1) on the constant-index specs would drop
    # their redundant second buffer, but they are never re-fetched anyway and
    # the saving is ~100 KiB of VMEM, so the default pipelining is kept.
    return pl.pallas_call(
        dqn_kernel,
        out_shape=jax.ShapeDtypeStruct((batch, out_size), jnp.float32),
        grid=grid,
        in_specs=[
            pl.BlockSpec((tile_b, in_size), lambda i: (i, 0)),  # pipelined activation tile
            pl.BlockSpec(w1.shape, const),
            pl.BlockSpec(w2.shape, const),
            pl.BlockSpec(w3.shape, const),
            pl.BlockSpec(b1.shape, const),
            pl.BlockSpec(b2.shape, const),
            pl.BlockSpec(b3.shape, const),
        ],
        out_specs=pl.BlockSpec((tile_b, out_size), lambda i: (i, 0)),
        compiler_params=pltpu.CompilerParams(
            dimension_semantics=("parallel",)),
        cost_estimate=pl.CostEstimate(
            flops=flops, transcendentals=0, bytes_accessed=bytes_accessed),
    )(x, w1, w2, w3, b1, b2, b3)


def dqn_reference(x, params):
    w1, b1, w2, b2, w3, b3 = params
    h1 = jnp.maximum(x @ w1 + b1, 0.0)
    h2 = jnp.maximum(h1 @ w2 + b2, 0.0)
    return h2 @ w3 + b3


if __name__ == "__main__":
    key = jax.random.PRNGKey(0)
    batch, input_size, output_size = 8, 32, 8

    k_x, k_p = jax.random.split(key)
    x = jax.random.normal(k_x, (batch, input_size), jnp.float32)
    params = init_params(k_p, input_size, output_size)
    prepared = prepare_params(params)

    fwd = jax.jit(dqn_forward)
    out = jax.block_until_ready(fwd(x, prepared))

    ref = dqn_reference(x, params)
    assert out.shape == (batch, output_size)
    # bf16 weights/activations (f32 accumulation) => loosened tolerance vs f32 ref.
    assert jnp.allclose(out, ref, atol=5e-2, rtol=5e-2), float(jnp.max(jnp.abs(out - ref)))

    print("KERNEL_OK")
</pallas_src>

<mosaic_0001>
module attributes {stable_mosaic.version = 11 : i64} {
  func.func @dqn_kernel(%arg0: i32, %arg1: memref<16x32xf32, #tpu.memory_space<vmem>>, %arg2: memref<32x128xbf16, #tpu.memory_space<vmem>>, %arg3: memref<128x64xbf16, #tpu.memory_space<vmem>>, %arg4: memref<64x8xbf16, #tpu.memory_space<vmem>>, %arg5: memref<1x128xf32, #tpu.memory_space<vmem>>, %arg6: memref<1x64xf32, #tpu.memory_space<vmem>>, %arg7: memref<1x8xf32, #tpu.memory_space<vmem>>, %arg8: memref<16x8xf32, #tpu.memory_space<vmem>>) attributes {dimension_semantics = [#tpu.dimension_semantics<parallel>], iteration_bounds = array<i64: 1>, scalar_prefetch = 0 : i64, scratch_operands = 0 : i64, tpu.core_type = #tpu.core_type<tc>, window_params = [{transform_indices = @transform_0, window_bounds = array<i64: 16, 32>}, {pipeline_mode = #tpu.pipeline_mode<synchronous>, transform_indices = @transform_1, window_bounds = array<i64: 32, 128>}, {pipeline_mode = #tpu.pipeline_mode<synchronous>, transform_indices = @transform_2, window_bounds = array<i64: 128, 64>}, {pipeline_mode = #tpu.pipeline_mode<synchronous>, transform_indices = @transform_3, window_bounds = array<i64: 64, 8>}, {pipeline_mode = #tpu.pipeline_mode<synchronous>, transform_indices = @transform_4, window_bounds = array<i64: 1, 128>}, {pipeline_mode = #tpu.pipeline_mode<synchronous>, transform_indices = @transform_5, window_bounds = array<i64: 1, 64>}, {pipeline_mode = #tpu.pipeline_mode<synchronous>, transform_indices = @transform_6, window_bounds = array<i64: 1, 8>}, {transform_indices = @transform_7, window_bounds = array<i64: 16, 8>}]} {
    %c0 = arith.constant 0 : index
    %c0_0 = arith.constant 0 : index
    %0 = vector.load %arg1[%c0, %c0_0] : memref<16x32xf32, #tpu.memory_space<vmem>>, vector<16x32xf32>
    %1 = arith.truncf %0 : vector<16x32xf32> to vector<16x32xbf16>
    %c0_1 = arith.constant 0 : index
    %c0_2 = arith.constant 0 : index
    %2 = vector.load %arg2[%c0_1, %c0_2] : memref<32x128xbf16, #tpu.memory_space<vmem>>, vector<32x128xbf16>
    %cst = arith.constant dense<0.000000e+00> : vector<16x128xf32>
    %3 = tpu.matmul %1, %2, %cst {dimension_numbers = #tpu.dot_dimension_numbers<[1], [0], [0], [1], [0, 0, 1, 1], [], []>} : vector<16x32xbf16>, vector<32x128xbf16>, vector<16x128xf32> -> vector<16x128xf32>
    %c0_3 = arith.constant 0 : index
    %c0_4 = arith.constant 0 : index
    %4 = vector.load %arg5[%c0_3, %c0_4] : memref<1x128xf32, #tpu.memory_space<vmem>>, vector<1x128xf32>
    %5 = vector.broadcast %4 : vector<1x128xf32> to vector<16x128xf32>
    %6 = arith.addf %3, %5 : vector<16x128xf32>
    %cst_5 = arith.constant 0.000000e+00 : f32
    %7 = vector.broadcast %cst_5 : f32 to vector<16x128xf32>
    %8 = arith.maximumf %6, %7 : vector<16x128xf32>
    %9 = arith.truncf %8 : vector<16x128xf32> to vector<16x128xbf16>
    %c0_6 = arith.constant 0 : index
    %c0_7 = arith.constant 0 : index
    %10 = vector.load %arg3[%c0_6, %c0_7] : memref<128x64xbf16, #tpu.memory_space<vmem>>, vector<128x64xbf16>
    %cst_8 = arith.constant dense<0.000000e+00> : vector<16x64xf32>
    %11 = tpu.matmul %9, %10, %cst_8 {dimension_numbers = #tpu.dot_dimension_numbers<[1], [0], [0], [1], [0, 0, 1, 1], [], []>} : vector<16x128xbf16>, vector<128x64xbf16>, vector<16x64xf32> -> vector<16x64xf32>
    %c0_9 = arith.constant 0 : index
    %c0_10 = arith.constant 0 : index
    %12 = vector.load %arg6[%c0_9, %c0_10] : memref<1x64xf32, #tpu.memory_space<vmem>>, vector<1x64xf32>
    %13 = vector.broadcast %12 : vector<1x64xf32> to vector<16x64xf32>
    %14 = arith.addf %11, %13 : vector<16x64xf32>
    %cst_11 = arith.constant 0.000000e+00 : f32
    %15 = vector.broadcast %cst_11 : f32 to vector<16x64xf32>
    %16 = arith.maximumf %14, %15 : vector<16x64xf32>
    %17 = arith.truncf %16 : vector<16x64xf32> to vector<16x64xbf16>
    %c0_12 = arith.constant 0 : index
    %c0_13 = arith.constant 0 : index
    %18 = vector.load %arg4[%c0_12, %c0_13] : memref<64x8xbf16, #tpu.memory_space<vmem>>, vector<64x8xbf16>
    %cst_14 = arith.constant dense<0.000000e+00> : vector<16x8xf32>
    %19 = tpu.matmul %17, %18, %cst_14 {dimension_numbers = #tpu.dot_dimension_numbers<[1], [0], [0], [1], [0, 0, 1, 1], [], []>} : vector<16x64xbf16>, vector<64x8xbf16>, vector<16x8xf32> -> vector<16x8xf32>
    %c0_15 = arith.constant 0 : index
    %c0_16 = arith.constant 0 : index
    %20 = vector.load %arg7[%c0_15, %c0_16] : memref<1x8xf32, #tpu.memory_space<vmem>>, vector<1x8xf32>
    %21 = vector.broadcast %20 : vector<1x8xf32> to vector<16x8xf32>
    %22 = arith.addf %19, %21 : vector<16x8xf32>
    %c0_17 = arith.constant 0 : index
    %c0_18 = arith.constant 0 : index
    %23 = vector.load %arg8[%c0_17, %c0_18] : memref<16x8xf32, #tpu.memory_space<vmem>>, vector<16x8xf32>
    tpu.vector_store %arg8[%c0_17, %c0_18], %22 {strides = array<i32>} : memref<16x8xf32, #tpu.memory_space<vmem>>, vector<16x8xf32>,
    return
  }
  func.func @transform_0(%arg0: i32) -> (i32, i32) {
    %c0_i32 = arith.constant 0 : i32
    %c0_i32_0 = arith.constant 0 : i32
    return %arg0, %c0_i32 : i32, i32
  }
  func.func @transform_1(%arg0: i32) -> (i32, i32) {
    %c0_i32 = arith.constant 0 : i32
    %c0_i32_0 = arith.constant 0 : i32
    %c0_i32_1 = arith.constant 0 : i32
    return %c0_i32, %c0_i32_0 : i32, i32
  }
  func.func @transform_2(%arg0: i32) -> (i32, i32) {
    %c0_i32 = arith.constant 0 : i32
    %c0_i32_0 = arith.constant 0 : i32
    %c0_i32_1 = arith.constant 0 : i32
    return %c0_i32, %c0_i32_0 : i32, i32
  }
  func.func @transform_3(%arg0: i32) -> (i32, i32) {
    %c0_i32 = arith.constant 0 : i32
    %c0_i32_0 = arith.constant 0 : i32
    %c0_i32_1 = arith.constant 0 : i32
    return %c0_i32, %c0_i32_0 : i32, i32
  }
  func.func @transform_4(%arg0: i32) -> (i32, i32) {
    %c0_i32 = arith.constant 0 : i32
    %c0_i32_0 = arith.constant 0 : i32
    %c0_i32_1 = arith.constant 0 : i32
    return %c0_i32, %c0_i32_0 : i32, i32
  }
  func.func @transform_5(%arg0: i32) -> (i32, i32) {
    %c0_i32 = arith.constant 0 : i32
    %c0_i32_0 = arith.constant 0 : i32
    %c0_i32_1 = arith.constant 0 : i32
    return %c0_i32, %c0_i32_0 : i32, i32
  }
  func.func @transform_6(%arg0: i32) -> (i32, i32) {
    %c0_i32 = arith.constant 0 : i32
    %c0_i32_0 = arith.constant 0 : i32
    %c0_i32_1 = arith.constant 0 : i32
    return %c0_i32, %c0_i32_0 : i32, i32
  }
  func.func @transform_7(%arg0: i32) -> (i32, i32) {
    %c0_i32 = arith.constant 0 : i32
    %c0_i32_0 = arith.constant 0 : i32
    return %arg0, %c0_i32 : i32, i32
  }
}

</mosaic_0001>

<llo_original>
// kernel: dqn_forward.1
$region0: #{dqn_forward.1}
  #allocation0 [shape = 'u32[]', space=smem, size = 0x4, offset = 0x4, fixed_abs, tag = 'smem constant byte address 0x4 - core index']
  #allocation1 [shape = 'u32[144,128]{1,0:T(1,128)}', space=vmem, size = 0x12000, scoped, tag = 'internal scratch']
  %s0 = inlined_call_operand.vmem [shape: f32[8,32], index: 0, kind: input, shape index: {}]
  %s1 = inlined_call_operand.vmem [shape: bf16[32,128], index: 1, kind: input, shape index: {}]
  %s2 = inlined_call_operand.vmem [shape: bf16[128,64], index: 2, kind: input, shape index: {}]
  %s3 = inlined_call_operand.vmem [shape: bf16[64,8], index: 3, kind: input, shape index: {}]
  %s4 = inlined_call_operand.vmem [shape: f32[1,128], index: 4, kind: input, shape index: {}]
  %s5 = inlined_call_operand.vmem [shape: f32[1,64], index: 5, kind: input, shape index: {}]
  %s6 = inlined_call_operand.vmem [shape: f32[1,8], index: 6, kind: input, shape index: {}]
  %s7 = inlined_call_operand.hbm [shape: f32[8,8], index: 7, kind: output, shape index: {}]
  %s8 = sld [smem:[#allocation0]]
  $region38: #{dqn_forward.1} parent=0
    _
  %s10 = ssub.s32 1, %s8
  %s11 = scalar_select 0, %s10, %s8
  $region1: #{dqn_forward.1} parent=0
    #allocation2 [shape = 'u8[8192]{0}', space=vmem, size = 0x2000, scoped, tag = 'output window, operand 0, single buffered']
    #allocation3 [shape = 's32[1]{0}', space=sflag, size = 0x4, scoped, tag = 'scoped memory for dqn_forward.1']
    %12 = vsyncpa [#allocation3], 0
    // Predicated region
    $region2: #{dqn_forward.1} parent=1 // pred_check
      _
    $region3: #{dqn_forward.1} parent=1 // pred_check_branch
      %14 = sbr.rel (0) target = $region5
    $region4: #{dqn_forward.1} parent=1 // pred_region
      _
    $region5: #{dqn_forward.1} parent=1 // pred_fallthru
      _
    // Predicated region
    $region6: #{dqn_forward.1} parent=1 // pred_check
      _
    $region7: #{dqn_forward.1} parent=1 // pred_check_branch
      %16 = sbr.rel (0) target = $region9
    $region8: #{dqn_forward.1} parent=1 // pred_region
      _
    $region9: #{dqn_forward.1} parent=1 // pred_fallthru
      _
    // Predicated region
    $region10: #{dqn_forward.1} parent=1 // pred_check
      _
    $region11: #{dqn_forward.1} parent=1 // pred_check_branch
      %18 = sbr.rel (0) target = $region13
    $region12: #{dqn_forward.1} parent=1 // pred_region
      _
    $region13: #{dqn_forward.1} parent=1 // pred_fallthru
      _
    // Predicated region
    $region14: #{dqn_forward.1} parent=1 // pred_check
      _
    $region15: #{dqn_forward.1} parent=1 // pred_check_branch
      %20 = sbr.rel (0) target = $region17
    $region16: #{dqn_forward.1} parent=1 // pred_region
      _
    $region17: #{dqn_forward.1} parent=1 // pred_fallthru
      _
    // Predicated region
    $region18: #{dqn_forward.1} parent=1 // pred_check
      _
    $region19: #{dqn_forward.1} parent=1 // pred_check_branch
      %22 = sbr.rel (0) target = $region21
    $region20: #{dqn_forward.1} parent=1 // pred_region
      _
    $region21: #{dqn_forward.1} parent=1 // pred_fallthru
      _
    // Predicated region
    $region22: #{dqn_forward.1} parent=1 // pred_check
      _
    $region23: #{dqn_forward.1} parent=1 // pred_check_branch
      %24 = sbr.rel (0) target = $region25
    $region24: #{dqn_forward.1} parent=1 // pred_region
      _
    $region25: #{dqn_forward.1} parent=1 // pred_fallthru
      _
    // Predicated region
    $region26: #{dqn_forward.1} parent=1 // pred_check
      _
    $region27: #{dqn_forward.1} parent=1 // pred_check_branch
      %26 = sbr.rel (0) target = $region29
    $region28: #{dqn_forward.1} parent=1 // pred_region
      _
    $region29: #{dqn_forward.1} parent=1 // pred_fallthru
      _
    %v28 = vld [vmem:[%s0] sm:$0xff]
    %v29 = vld [vmem:[%s0 + $0x8] sm:$0xff]
    %v30 = vpack.c.bf16 %v29, %v28
    %v31 = vld [vmem:[%s1] sm:$0xf]
    %v32 = vld [vmem:[%s1 + $0x4] sm:$0xf]
    %v33 = vld [vmem:[%s1 + $0x8] sm:$0xf]
    %v34 = vld [vmem:[%s1 + $0xc] sm:$0xf]
    %v35 = vld [vmem:[%s4] sm:$0x1]
    %v37 = vlaneseq
    %v38 = vshrl.u32 %v37, 7
    %v39 = vsub.s32 0, %v38
    %v40 = vrot.slane %v35, %v39
    %v46 = vunpack.c.l.b16 %v31
    %v47 = vunpack.c.l.b16 %v32
    %v48 = vunpack.c.l.b16 %v33
    %v49 = vunpack.c.l.b16 %v34
    %v50 = vpack.c.b16 %v47, %v46
    %v51 = vpack.c.b16 %v49, %v48
    %vm54 = vcmask 261120
    %v56 = vsel %vm54, %v30, 0
    %58 = vmatprep.subr.bf16.mxu0 0
    %59 = vmatpush1.bf16.msra.mxu0 0
    %60 = vmatprep.subr.bf16.mxu0 0
    %61 = vmatpush1.bf16.msra.mxu0 0
    %62 = vmatprep.subr.bf16.mxu0 0
    %63 = vmatpush1.bf16.msra.mxu0 0
    %64 = vmatprep.subr.bf16.mxu0 0
    %65 = vmatpush1.bf16.msra.mxu0 0
    %66 = vmatprep.subr.bf16.mxu0 0
    %67 = vmatpush1.bf16.msra.mxu0 0
    %68 = vmatprep.subr.bf16.mxu0 0
    %69 = vmatpush1.bf16.msra.mxu0 0
    %70 = vmatprep.subr.bf16.mxu0 0
    %71 = vmatpush1.bf16.msra.mxu0 %v51
    %72 = vmatprep.subr.bf16.mxu0 0
    %73 = vmatpush1.bf16.msra.mxu0 %v50
    %74 = vmatprep.subr.bf16.mxu0 0
    %75 = vmatpush2.bf16.msra.mxu0 0
    %76 = vmatprep.subr.bf16.mxu0 0
    %77 = vmatpush2.bf16.msra.mxu0 0
    %78 = vmatprep.subr.bf16.mxu0 0
    %79 = vmatpush2.bf16.msra.mxu0 0
    %80 = vmatprep.subr.bf16.mxu0 0
    %81 = vmatpush2.bf16.msra.mxu0 0
    %82 = vmatprep.subr.bf16.mxu0 0
    %83 = vmatpush2.bf16.msra.mxu0 0
    %84 = vmatprep.subr.bf16.mxu0 0
    %85 = vmatpush2.bf16.msra.mxu0 0
    %86 = vmatprep.subr.bf16.mxu0 0
    %87 = vmatpush2.bf16.msra.mxu0 0
    %88 = vmatprep.subr.bf16.mxu0 0
    %89 = vmatpush2.bf16.msra.mxu0 0
    %90 = vmatprep.mubr.bf16.mxu0 0
    %91 = vmatmul.mubr.bf16.gmra.mxu0 %v56
    %v92 = vpop.f32.mrf.mxu0
    %v93 = vadd.f32 %v40, %v92
    %v94 = vpop.f32.mrf.mxu0
    %v95 = vpop.f32.mrf.mxu0
    %v96 = vadd.f32 %v40, %v95
    %v97 = vpop.f32.mrf.mxu0
    %98 = vdwg.mxu0
    %v99 = vmax.f32 %v93, 0.0
    %v100 = vmax.f32 %v96, 0.0
    %v101 = vpack.c.bf16 %v100, %v99
    %v102 = vld [vmem:[%s2] sm:$0xf]
    %v103 = vld [vmem:[%s2 + $0x4] sm:$0xf]
    %v104 = vld [vmem:[%s2 + $0x8] sm:$0xf]
    %v105 = vld [vmem:[%s2 + $0xc] sm:$0xf]
    %v106 = vld [vmem:[%s2 + $0x10] sm:$0xf]
    %v107 = vld [vmem:[%s2 + $0x14] sm:$0xf]
    %v108 = vld [vmem:[%s2 + $0x18] sm:$0xf]
    %v109 = vld [vmem:[%s2 + $0x1c] sm:$0xf]
    %v110 = vld [vmem:[%s2 + $0x20] sm:$0xf]
    %v111 = vld [vmem:[%s2 + $0x24] sm:$0xf]
    %v112 = vld [vmem:[%s2 + $0x28] sm:$0xf]
    %v113 = vld [vmem:[%s2 + $0x2c] sm:$0xf]
    %v114 = vld [vmem:[%s2 + $0x30] sm:$0xf]
    %v115 = vld [vmem:[%s2 + $0x34] sm:$0xf]
    %v116 = vld [vmem:[%s2 + $0x38] sm:$0xf]
    %v117 = vld [vmem:[%s2 + $0x3c] sm:$0xf]
    %v118 = vld [vmem:[%s5] sm:$0x1]
    %v120 = vlaneseq
    %v121 = vshrl.u32 %v120, 7
    %v122 = vsub.s32 0, %v121
    %v123 = vrot.slane %v118, %v122
    %v141 = vunpack.c.l.b16 %v102
    %v142 = vunpack.c.l.b16 %v103
    %v143 = vunpack.c.l.b16 %v104
    %v144 = vunpack.c.l.b16 %v105
    %v145 = vunpack.c.l.b16 %v106
    %v146 = vunpack.c.l.b16 %v107
    %v147 = vunpack.c.l.b16 %v108
    %v148 = vunpack.c.l.b16 %v109
    %v149 = vunpack.c.l.b16 %v110
    %v150 = vunpack.c.l.b16 %v111
    %v151 = vunpack.c.l.b16 %v112
    %v152 = vunpack.c.l.b16 %v113
    %v153 = vunpack.c.l.b16 %v114
    %v154 = vunpack.c.l.b16 %v115
    %v155 = vunpack.c.l.b16 %v116
    %v156 = vunpack.c.l.b16 %v117
    %v157 = vpack.c.b16 %v142, %v141
    %v158 = vpack.c.b16 %v144, %v143
    %v159 = vpack.c.b16 %v146, %v145
    %v160 = vpack.c.b16 %v148, %v147
    %v161 = vpack.c.b16 %v150, %v149
    %v162 = vpack.c.b16 %v152, %v151
    %v163 = vpack.c.b16 %v154, %v153
    %v164 = vpack.c.b16 %v156, %v155
    %173 = vmatprep.subr.bf16.mxu0 0
    %174 = vmatpush1.bf16.msra.mxu0 %v164
    %175 = vmatprep.subr.bf16.mxu0 0
    %176 = vmatpush1.bf16.msra.mxu0 %v163
    %177 = vmatprep.subr.bf16.mxu0 0
    %178 = vmatpush1.bf16.msra.mxu0 %v162
    %179 = vmatprep.subr.bf16.mxu0 0
    %180 = vmatpush1.bf16.msra.mxu0 %v161
    %181 = vmatprep.subr.bf16.mxu0 0
    %182 = vmatpush1.bf16.msra.mxu0 %v160
    %183 = vmatprep.subr.bf16.mxu0 0
    %184 = vmatpush1.bf16.msra.mxu0 %v159
    %185 = vmatprep.subr.bf16.mxu0 0
    %186 = vmatpush1.bf16.msra.mxu0 %v158
    %187 = vmatprep.subr.bf16.mxu0 0
    %188 = vmatpush1.bf16.msra.mxu0 %v157
    %189 = vmatprep.subr.bf16.mxu0 0
    %190 = vmatpush2.bf16.msra.mxu0 0
    %191 = vmatprep.subr.bf16.mxu0 0
    %192 = vmatpush2.bf16.msra.mxu0 0
    %193 = vmatprep.subr.bf16.mxu0 0
    %194 = vmatpush2.bf16.msra.mxu0 0
    %195 = vmatprep.subr.bf16.mxu0 0
    %196 = vmatpush2.bf16.msra.mxu0 0
    %197 = vmatprep.subr.bf16.mxu0 0
    %198 = vmatpush2.bf16.msra.mxu0 0
    %199 = vmatprep.subr.bf16.mxu0 0
    %200 = vmatpush2.bf16.msra.mxu0 0
    %201 = vmatprep.subr.bf16.mxu0 0
    %202 = vmatpush2.bf16.msra.mxu0 0
    %203 = vmatprep.subr.bf16.mxu0 0
    %204 = vmatpush2.bf16.msra.mxu0 0
    %205 = vmatprep.mubr.bf16.mxu0 0
    %206 = vmatmul.mubr.bf16.gmra.mxu0 %v101
    %v207 = vpop.f32.mrf.mxu0
    %v208 = vadd.f32 %v123, %v207
    %v209 = vpop.f32.mrf.mxu0
    %v210 = vpop.f32.mrf.mxu0
    %v211 = vadd.f32 %v123, %v210
    %v212 = vpop.f32.mrf.mxu0
    %213 = vdwg.mxu0
    %v214 = vmax.f32 %v208, 0.0
    %v215 = vmax.f32 %v211, 0.0
    %v216 = vpack.c.bf16 %v215, %v214
    %v217 = vld [vmem:[%s3] sm:$0xf]
    %v218 = vld [vmem:[%s3 + $0x4] sm:$0xf]
    %v219 = vld [vmem:[%s3 + $0x8] sm:$0xf]
    %v220 = vld [vmem:[%s3 + $0xc] sm:$0xf]
    %v221 = vld [vmem:[%s3 + $0x10] sm:$0xf]
    %v222 = vld [vmem:[%s3 + $0x14] sm:$0xf]
    %v223 = vld [vmem:[%s3 + $0x18] sm:$0xf]
    %v224 = vld [vmem:[%s3 + $0x1c] sm:$0xf]
    %v225 = vld [vmem:[%s6] sm:$0x1]
    %v227 = vlaneseq
    %v228 = vshrl.u32 %v227, 7
    %v229 = vsub.s32 0, %v228
    %v230 = vrot.slane %v225, %v229
    %v240 = vunpack.c.l.b16 %v217
    %v241 = vunpack.c.l.b16 %v218
    %v242 = vunpack.c.l.b16 %v219
    %v243 = vunpack.c.l.b16 %v220
    %v244 = vunpack.c.l.b16 %v221
    %v245 = vunpack.c.l.b16 %v222
    %v246 = vunpack.c.l.b16 %v223
    %v247 = vunpack.c.l.b16 %v224
    %v248 = vpack.c.b16 %v241, %v240
    %v249 = vpack.c.b16 %v243, %v242
    %v250 = vpack.c.b16 %v245, %v244
    %v251 = vpack.c.b16 %v247, %v246
    %vm256 = vcmask 523264
    %v258 = vsel %vm256, %v216, 0
    %260 = vmatprep.subr.bf16.mxu0 0
    %261 = vmatpush1.bf16.msra.mxu0 0
    %262 = vmatprep.subr.bf16.mxu0 0
    %263 = vmatpush1.bf16.msra.mxu0 0
    %264 = vmatprep.subr.bf16.mxu0 0
    %265 = vmatpush1.bf16.msra.mxu0 0
    %266 = vmatprep.subr.bf16.mxu0 0
    %267 = vmatpush1.bf16.msra.mxu0 0
    %268 = vmatprep.subr.bf16.mxu0 0
    %269 = vmatpush1.bf16.msra.mxu0 %v251
    %270 = vmatprep.subr.bf16.mxu0 0
    %271 = vmatpush1.bf16.msra.mxu0 %v250
    %272 = vmatprep.subr.bf16.mxu0 0
    %273 = vmatpush1.bf16.msra.mxu0 %v249
    %274 = vmatprep.subr.bf16.mxu0 0
    %275 = vmatpush1.bf16.msra.mxu0 %v248
    %276 = vmatprep.subr.bf16.mxu0 0
    %277 = vmatpush2.bf16.msra.mxu0 0
    %278 = vmatprep.subr.bf16.mxu0 0
    %279 = vmatpush2.bf16.msra.mxu0 0
    %280 = vmatprep.subr.bf16.mxu0 0
    %281 = vmatpush2.bf16.msra.mxu0 0
    %282 = vmatprep.subr.bf16.mxu0 0
    %283 = vmatpush2.bf16.msra.mxu0 0
    %284 = vmatprep.subr.bf16.mxu0 0
    %285 = vmatpush2.bf16.msra.mxu0 0
    %286 = vmatprep.subr.bf16.mxu0 0
    %287 = vmatpush2.bf16.msra.mxu0 0
    %288 = vmatprep.subr.bf16.mxu0 0
    %289 = vmatpush2.bf16.msra.mxu0 0
    %290 = vmatprep.subr.bf16.mxu0 0
    %291 = vmatpush2.bf16.msra.mxu0 0
    %292 = vmatprep.mubr.bf16.mxu0 0
    %293 = vmatmul.mubr.bf16.gmra.mxu0 %v258
    %v294 = vpop.f32.mrf.mxu0
    %v295 = vadd.f32 %v230, %v294
    %v296 = vpop.f32.mrf.mxu0
    %v297 = vpop.f32.mrf.mxu0
    %v298 = vadd.f32 %v230, %v297
    %v299 = vpop.f32.mrf.mxu0
    %300 = vdwg.mxu0
    %vm301 = vcmask 64512
    %302 = vst.msk [vmem:[#allocation2] sm:$0xff] %vm301, %v295
    %303 = vst.msk [vmem:[#allocation2 + $0x8] sm:$0xff] %vm301, %v298
    // Predicated region
    $region30: #{dqn_forward.1} parent=1 // pred_check
      _
    $region31: #{dqn_forward.1} parent=1 // pred_check_branch
      %305 = sbr.rel (0) target = $region33
    $region32: #{dqn_forward.1} parent=1 // pred_region
      %s307 = ssub.s32 256, 128
      %308 = vsyncadd [#allocation3], %s307
      %s309 = sshll.u32 [#allocation2], 4
      %s310 = int_to_ptr.vmem [resolvable:$true] %s309
      %315 = dma.vmem_to_hbm [thread:$0]  %s310, 128, %s7, [#allocation3], 128, 128, 8
    $region33: #{dqn_forward.1} parent=1 // pred_fallthru
      _
    // Predicated region
    $region34: #{dqn_forward.1} parent=1 // pred_check
      _
    $region35: #{dqn_forward.1} parent=1 // pred_check_branch
      %317 = sbr.rel (0) target = $region37
    $region36: #{dqn_forward.1} parent=1 // pred_region
      %318 = dma.done [#allocation3], 256
    $region37: #{dqn_forward.1} parent=1 // pred_fallthru
      _
    %319 = vsyncpa [#allocation3], 1

</llo_original>
